<compile_context>
chip_gen: v7x
topology: tpu7x:2x2x1
jax: 0.10.0
libtpu: 0.0.40
codegen_flags: <defaults>
</compile_context>

<pallas_src>
import jax
import jax.numpy as jnp
from jax.experimental import pallas as pl
from jax.experimental.pallas import tpu as pltpu

MARGIN = 0.3
PW_EPS = 1e-6  # nn.PairwiseDistance default eps (added to the difference)


def proto_loss_kernel(feat_ref, protos_ref, lab_ref, out_ref):
    feats = feat_ref[...].astype(jnp.float32)          # (B, D)
    # Fold eps into the (2, D) prototypes once: f - p + eps == f - (p - eps).
    protos_e = protos_ref[...].astype(jnp.float32) - PW_EPS   # (2, D)
    labels = lab_ref[...]                               # (B, 1) int32

    diff_pos = feats - protos_e[0:1, :]                 # (B, D)
    diff_neg = feats - protos_e[1:2, :]                 # (B, D)

    sq_pos = jnp.sum(diff_pos * diff_pos, axis=1, keepdims=True)   # (B, 1)
    sq_neg = jnp.sum(diff_neg * diff_neg, axis=1, keepdims=True)   # (B, 1)

    # Single EUP sqrt over both distance columns.
    d = jnp.sqrt(jnp.concatenate([sq_pos, sq_neg], axis=1))        # (B, 2)
    d_diff = d[:, 0:1] - d[:, 1:2]                                  # (B, 1) = d_pos - d_neg

    # dist_same - dist_opp == (d_pos - d_neg) * sign, sign = +1 iff label==1 else -1
    sign = jnp.where(labels == 1, 1.0, -1.0)                        # (B, 1) f32

    # MarginRankingLoss(margin, reduction='mean') with target y = -1:
    #   loss_i = max(0, -y*(x1 - x2) + margin) = max(0, (x1 - x2) + margin)
    per_sample = jnp.maximum(d_diff * sign + MARGIN, 0.0)           # (B, 1)

    b = per_sample.shape[0]
    out_ref[0, 0] = jnp.sum(per_sample) * (1.0 / b)


def proto_loss(features, proto_pos, proto_neg, labels):
    B, D = features.shape
    labels2d = labels.reshape(B, 1).astype(jnp.int32)
    protos = jnp.concatenate(
        [proto_pos.reshape(1, D), proto_neg.reshape(1, D)], axis=0
    )  # (2, D): single operand -> one fewer DMA setup

    cost = pl.CostEstimate(
        flops=6 * B * D,                       # 2 diffs + 2 squares + 2 reduce-adds per element
        transcendentals=2 * B,                 # 2 sqrts per row
        bytes_accessed=4 * B * D + 8 * D + 4 * B + 4,
    )

    out = pl.pallas_call(
        proto_loss_kernel,
        out_shape=jax.ShapeDtypeStruct((1, 1), jnp.float32),
        in_specs=[
            pl.BlockSpec(memory_space=pltpu.MemorySpace.VMEM),  # features (B, D)
            pl.BlockSpec(memory_space=pltpu.MemorySpace.VMEM),  # protos   (2, D)
            pl.BlockSpec(memory_space=pltpu.MemorySpace.VMEM),  # labels   (B, 1)
        ],
        out_specs=pl.BlockSpec(memory_space=pltpu.MemorySpace.SMEM),
        cost_estimate=cost,
    )(features, protos, labels2d)
    return out[0, 0]


def proto_loss_ref(features, proto_pos, proto_neg, labels):
    # Pure-JAX reference for sanity checking.
    d_pos = jnp.sqrt(jnp.sum((features - proto_pos + PW_EPS) ** 2, axis=1))
    d_neg = jnp.sqrt(jnp.sum((features - proto_neg + PW_EPS) ** 2, axis=1))
    pos = (labels == 1).astype(jnp.float32)
    neg = 1.0 - pos
    same = d_pos * pos + d_neg * neg
    opp = d_pos * neg + d_neg * pos
    return jnp.mean(jnp.maximum(same - opp + MARGIN, 0.0))


if __name__ == "__main__":
    B, D = 8, 32  # small shapes: batch=8 latent vectors of hidden=32

    key = jax.random.PRNGKey(0)
    k_feat, k_pos, k_neg, k_lab = jax.random.split(key, 4)

    features = jax.random.normal(k_feat, (B, D), dtype=jnp.float32)
    # Prototype vectors are architecture parameters — deterministic synthetic init.
    proto_pos = jax.random.normal(k_pos, (1, D), dtype=jnp.float32)
    proto_neg = jax.random.normal(k_neg, (1, D), dtype=jnp.float32)
    labels = jax.random.bernoulli(k_lab, 0.5, (B,)).astype(jnp.int32)

    loss = proto_loss(features, proto_pos, proto_neg, labels)
    loss = jax.block_until_ready(loss)

    ref = proto_loss_ref(features, proto_pos, proto_neg, labels)
    assert jnp.allclose(loss, ref, atol=1e-5, rtol=1e-5), (loss, ref)

    print("KERNEL_OK")
</pallas_src>

<mosaic_0001>
module attributes {stable_mosaic.version = 11 : i64} {
  func.func @proto_loss_kernel(%arg0: memref<8x32xf32, #tpu.memory_space<vmem>>, %arg1: memref<2x32xf32, #tpu.memory_space<vmem>>, %arg2: memref<8x1xi32, #tpu.memory_space<vmem>>, %arg3: memref<1x1xf32, #tpu.memory_space<smem>>) attributes {dimension_semantics = [], scalar_prefetch = 0 : i64, scratch_operands = 0 : i64, tpu.core_type = #tpu.core_type<tc>} {
    %c0 = arith.constant 0 : index
    %c0_0 = arith.constant 0 : index
    %0 = vector.load %arg0[%c0, %c0_0] : memref<8x32xf32, #tpu.memory_space<vmem>>, vector<8x32xf32>
    %c0_1 = arith.constant 0 : index
    %c0_2 = arith.constant 0 : index
    %1 = vector.load %arg1[%c0_1, %c0_2] : memref<2x32xf32, #tpu.memory_space<vmem>>, vector<2x32xf32>
    %cst = arith.constant 9.99999997E-7 : f32
    %2 = vector.broadcast %cst : f32 to vector<2x32xf32>
    %3 = arith.subf %1, %2 : vector<2x32xf32>
    %c0_3 = arith.constant 0 : index
    %c0_4 = arith.constant 0 : index
    %4 = vector.load %arg2[%c0_3, %c0_4] : memref<8x1xi32, #tpu.memory_space<vmem>>, vector<8x1xi32>
    %5 = vector.extract_strided_slice %3 {offsets = [0, 0], sizes = [1, 32], strides = [1, 1]} : vector<2x32xf32> to vector<1x32xf32>
    %6 = vector.broadcast %5 : vector<1x32xf32> to vector<8x32xf32>
    %7 = arith.subf %0, %6 : vector<8x32xf32>
    %8 = vector.extract_strided_slice %3 {offsets = [1, 0], sizes = [1, 32], strides = [1, 1]} : vector<2x32xf32> to vector<1x32xf32>
    %9 = vector.broadcast %8 : vector<1x32xf32> to vector<8x32xf32>
    %10 = arith.subf %0, %9 : vector<8x32xf32>
    %11 = arith.mulf %7, %7 : vector<8x32xf32>
    %cst_5 = arith.constant dense<0.000000e+00> : vector<8xf32>
    %12 = vector.multi_reduction <add>, %11, %cst_5 [1] : vector<8x32xf32> to vector<8xf32>
    %13 = vector.shape_cast %12 : vector<8xf32> to vector<8x1xf32>
    %14 = arith.mulf %10, %10 : vector<8x32xf32>
    %cst_6 = arith.constant dense<0.000000e+00> : vector<8xf32>
    %15 = vector.multi_reduction <add>, %14, %cst_6 [1] : vector<8x32xf32> to vector<8xf32>
    %16 = vector.shape_cast %15 : vector<8xf32> to vector<8x1xf32>
    %17 = tpu.concatenate %13, %16 in 1 : vector<8x1xf32>, vector<8x1xf32> -> vector<8x2xf32>
    %18 = math.sqrt %17 : vector<8x2xf32>
    %19 = vector.extract_strided_slice %18 {offsets = [0, 0], sizes = [8, 1], strides = [1, 1]} : vector<8x2xf32> to vector<8x1xf32>
    %20 = vector.extract_strided_slice %18 {offsets = [0, 1], sizes = [8, 1], strides = [1, 1]} : vector<8x2xf32> to vector<8x1xf32>
    %21 = arith.subf %19, %20 : vector<8x1xf32>
    %c1_i32 = arith.constant 1 : i32
    %22 = vector.broadcast %c1_i32 : i32 to vector<8x1xi32>
    %23 = arith.cmpi eq, %4, %22 : vector<8x1xi32>
    %cst_7 = arith.constant 1.000000e+00 : f32
    %cst_8 = arith.constant -1.000000e+00 : f32
    %24 = vector.broadcast %cst_7 : f32 to vector<8x1xf32>
    %25 = vector.broadcast %cst_8 : f32 to vector<8x1xf32>
    %26 = arith.select %23, %24, %25 : vector<8x1xi1>, vector<8x1xf32>
    %27 = arith.mulf %21, %26 : vector<8x1xf32>
    %cst_9 = arith.constant 3.000000e-01 : f32
    %28 = vector.broadcast %cst_9 : f32 to vector<8x1xf32>
    %29 = arith.addf %27, %28 : vector<8x1xf32>
    %cst_10 = arith.constant 0.000000e+00 : f32
    %30 = vector.broadcast %cst_10 : f32 to vector<8x1xf32>
    %31 = arith.maximumf %29, %30 : vector<8x1xf32>
    %32 = vector.shape_cast %31 : vector<8x1xf32> to vector<1x8x1xf32>
    %cst_11 = arith.constant dense<0.000000e+00> : vector<1xf32>
    %33 = vector.multi_reduction <add>, %32, %cst_11 [1, 2] : vector<1x8x1xf32> to vector<1xf32>
    %34 = vector.shape_cast %33 : vector<1xf32> to vector<1x1x1xf32>
    %35 = vector.extract %34[0, 0, 0] : f32 from vector<1x1x1xf32>
    %cst_12 = arith.constant 1.250000e-01 : f32
    %36 = arith.mulf %35, %cst_12 : f32
    %c0_13 = arith.constant 0 : index
    %c0_14 = arith.constant 0 : index
    %37 = memref.load %arg3[%c0_13, %c0_14] : memref<1x1xf32, #tpu.memory_space<smem>>
    memref.store %36, %arg3[%c0_13, %c0_14] : memref<1x1xf32, #tpu.memory_space<smem>>
    return
  }
}

</mosaic_0001>

<llo_original>
// kernel: tpu_custom_call.1
$region0: #{tpu_custom_call.1}
  #allocation0 [shape = 'u32[]', space=smem, size = 0x4, offset = 0x4, fixed_abs, tag = 'smem constant byte address 0x4 - core index']
  #allocation1 [shape = 'u32[144,128]{1,0:T(1,128)}', space=vmem, size = 0x12000, scoped, tag = 'internal scratch']
  %s0 = inlined_call_operand.vmem [shape: f32[8,32], index: 0, kind: input, shape index: {}]
  %s1 = inlined_call_operand.vmem [shape: f32[2,32], index: 1, kind: input, shape index: {}]
  %s2 = inlined_call_operand.vmem [shape: s32[8,1], index: 2, kind: input, shape index: {}]
  %s3 = inlined_call_operand.hbm [shape: f32[1,1], index: 3, kind: output, shape index: {}]
  %s4 = sld [smem:[#allocation0]]
  $region22: #{tpu_custom_call.1} parent=0
    _
  %s6 = ssub.s32 1, %s4
  %s7 = scalar_select 0, %s6, %s4
  $region1: #{tpu_custom_call.1} parent=0
    #allocation2 [shape = 'u8[512]{0}', space=smem, size = 0x200, scoped, tag = 'output window, operand 0, single buffered']
    #allocation3 [shape = 's32[1]{0}', space=sflag, size = 0x4, scoped, tag = 'scoped memory for tpu_custom_call.1']
    %8 = vsyncpa [#allocation3], 0
    // Predicated region
    $region2: #{tpu_custom_call.1} parent=1 // pred_check
      _
    $region3: #{tpu_custom_call.1} parent=1 // pred_check_branch
      %10 = sbr.rel (0) target = $region5
    $region4: #{tpu_custom_call.1} parent=1 // pred_region
      _
    $region5: #{tpu_custom_call.1} parent=1 // pred_fallthru
      _
    // Predicated region
    $region6: #{tpu_custom_call.1} parent=1 // pred_check
      _
    $region7: #{tpu_custom_call.1} parent=1 // pred_check_branch
      %12 = sbr.rel (0) target = $region9
    $region8: #{tpu_custom_call.1} parent=1 // pred_region
      _
    $region9: #{tpu_custom_call.1} parent=1 // pred_fallthru
      _
    // Predicated region
    $region10: #{tpu_custom_call.1} parent=1 // pred_check
      _
    $region11: #{tpu_custom_call.1} parent=1 // pred_check_branch
      %14 = sbr.rel (0) target = $region13
    $region12: #{tpu_custom_call.1} parent=1 // pred_region
      _
    $region13: #{tpu_custom_call.1} parent=1 // pred_fallthru
      _
    %v15 = vld [vmem:[%s0] sm:$0xff]
    %v16 = vld [vmem:[%s1] sm:$0x3]
    %v17 = vsub.f32 %v16, 1e-06
    %v18 = vld [vmem:[%s2] sm:$0xff]
    %v19 = vlaneseq
    %v20 = vshrl.u32 %v19, 7
    %v21 = vsub.s32 0, %v20
    %v22 = vrot.slane %v17, %v21
    %v23 = vsub.f32 %v15, %v22
    %v24 = vlaneseq
    %v25 = vshrl.u32 %v24, 7
    %v26 = vsub.s32 1, %v25
    %v27 = vrot.slane %v17, %v26
    %v28 = vsub.f32 %v15, %v27
    %v29 = vmul.f32 %v23, %v23
    %vm30 = vcmask 261120
    %v31 = vsel %vm30, %v29, 0.0
    %32 = vadd.xlane.f32.xlu0 %v31
    %v33 = vpop.xlane.xlu0 %32
    %v34 = vmul.f32 %v28, %v28
    %v35 = vsel %vm30, %v34, 0.0
    %36 = vadd.xlane.f32.xlu0 %v35
    %v37 = vpop.xlane.xlu0 %36
    %vm38 = vcmask 7168
    %v39 = vsel %vm38, %v33, %v37
    %v40 = vrsqrt.pop %v39
    %v41 = vmul.f32 %v39, %v40
    %vm42 = vcmp.eq.f32.partialorder %v39, inf
    %v43 = vsel %vm42, %v39, %v41
    %vm44 = vcmp.eq.f32.partialorder %v39, 0.0
    %v45 = vand.u32 %v39, 2147483648
    %v46 = vsel %vm44, %v45, %v43
    %48 = vrot.lane.b32.xlu0 %v46, 127
    %v49 = vpop.permute.xlu0 %48
    %v51 = vsub.f32 %v46, %v49
    %vm52 = vcmp.eq.s32.totalorder %v18, 1
    %v53 = vsel %vm52, 1.0, -1.0
    %v54 = vmul.f32 %v51, %v53
    %v55 = vadd.f32 %v54, 0.3
    %v56 = vmax.f32 %v55, 0.0
    %v57 = vsel %vm38, %v56, 0.0
    %58 = vadd.xlane.f32.xlu0 %v57
    %v59 = vpop.xlane.xlu0 %58
    %v60 = vrot.slane %v59, 4
    %v61 = vadd.f32 %v59, %v60
    %v62 = vrot.slane %v61, 2
    %v63 = vadd.f32 %v61, %v62
    %v64 = vrot.slane %v63, 1
    %v65 = vadd.f32 %v63, %v64
    %s66 = vtos %v65
    %s67 = smul.f32 %s66, 0.125
    %s68 = scalar_lea.smem [#allocation2], 0
    %69 = sst [smem:[%s68]] %s67
    // Predicated region
    $region14: #{tpu_custom_call.1} parent=1 // pred_check
      _
    $region15: #{tpu_custom_call.1} parent=1 // pred_check_branch
      %71 = sbr.rel (0) target = $region17
    $region16: #{tpu_custom_call.1} parent=1 // pred_region
      %s73 = ssub.s32 16, 16
      %74 = vsyncadd [#allocation3], %s73
      %77 = dma.smem_to_hbm [#allocation2], 16, %s3, [#allocation3]
    $region17: #{tpu_custom_call.1} parent=1 // pred_fallthru
      _
    // Predicated region
    $region18: #{tpu_custom_call.1} parent=1 // pred_check
      _
    $region19: #{tpu_custom_call.1} parent=1 // pred_check_branch
      %79 = sbr.rel (0) target = $region21
    $region20: #{tpu_custom_call.1} parent=1 // pred_region
      %80 = dma.done [#allocation3], 16
    $region21: #{tpu_custom_call.1} parent=1 // pred_fallthru
      _
    %81 = sfence
    %82 = vsyncpa [#allocation3], 1

</llo_original>
